<compile_context>
chip_gen: v6e
topology: v6e:2x2x1
jax: 0.10.0
libtpu: 0.0.40
codegen_flags: <defaults>
</compile_context>

<pallas_src>
import jax
import jax.numpy as jnp
from jax.experimental import pallas as pl
from jax.experimental.pallas import tpu as pltpu


def _round_up(x, m):
    return ((x + m - 1) // m) * m


def highway_kernel(x_ref, w_ref, b_ref, o_ref):
    x = x_ref[...]                                    # (tm, D) f32
    D = x.shape[1]

    # Single fused GEMM, natural (M,K)@(K,N) operand order: bf16 inputs,
    # f32 accumulation on the MXU. W is [W1^T | Wg^T] of shape (D, 2D).
    z = jnp.dot(
        x.astype(jnp.bfloat16),
        w_ref[...],                                   # (D, 2D) bf16
        preferred_element_type=jnp.float32,
    ) + b_ref[...]                                    # (tm, 2D) f32

    normal_fc = jnp.tanh(z[:, :D])                    # fc1 half
    # sigmoid(z) == 0.5 * (tanh(0.5 * z) + 1): single EUP op per element.
    gate = 0.5 * (jnp.tanh(0.5 * z[:, D:]) + 1.0)     # gate half

    # normal_fc * gate + x * (1 - gate)  ==  x + gate * (normal_fc - x)
    o_ref[...] = (x + gate * (normal_fc - x)).astype(o_ref.dtype)


def highway(x, w1, b1, wg, bg, *, tm=None):
    """x: (B, D) float32. w1/wg: (D, D) PyTorch-layout (out, in). b1/bg: (D,)."""
    B, D = x.shape

    # Fuse + pre-transpose weights once in the wrapper: (D, 2D) so the kernel
    # contracts x's lane dim against W's sublane dim (MXU-natural layout).
    w_cat = jnp.concatenate([w1.T, wg.T], axis=1).astype(jnp.bfloat16)   # (D, 2D)
    b_cat = jnp.concatenate([b1, bg], axis=0).reshape(1, 2 * D).astype(jnp.float32)

    # D-scaled batch tile: ~2 MiB of f32 x per tile, multiple of 256 rows.
    if tm is None:
        tm = max(256, _round_up((2 << 20) // (4 * D), 256))
    B_r8 = _round_up(B, 8)
    tm_eff = min(tm, B_r8)
    # Ensure >= 2 grid steps when possible so both v7x TensorCores get work.
    if B_r8 >= 16 and B_r8 <= tm_eff:
        tm_eff = _round_up(pl.cdiv(B_r8, 2), 8)
    B_pad = _round_up(B, tm_eff)
    x_in = jnp.pad(x, ((0, B_pad - B), (0, 0))) if B_pad != B else x

    # Explicit VMEM budget: x/out double-buffered f32 tiles + single-buffered
    # bf16 weight + f32 z/elementwise temporaries, with 2x headroom; capped
    # below v7x's 64 MiB physical VMEM (also lifts v5e's 16 MiB default scope).
    vmem_est = (
        4 * tm_eff * D * 4          # x + out tiles, double buffered
        + 2 * D * (2 * D)           # fused bf16 weight, single buffer
        + (2 * D) * 4               # fused f32 bias
        + 4 * tm_eff * (2 * D) * 4  # z + elementwise intermediates (generous)
    )
    vmem_limit = int(min(max(2 * vmem_est, 32 * 1024 * 1024), 60 * 1024 * 1024))
    # TODO(synk): for D > ~2.8K (bf16 weight > 32 MiB) add an N grid axis that
    # tiles the 2D output columns instead of keeping the full weight resident.

    grid = (B_pad // tm_eff,)
    out = pl.pallas_call(
        highway_kernel,
        out_shape=jax.ShapeDtypeStruct((B_pad, D), x.dtype),
        grid_spec=pltpu.PrefetchScalarGridSpec(
            num_scalar_prefetch=0,
            grid=grid,
            in_specs=[
                pl.BlockSpec((tm_eff, D), lambda i: (i, 0)),        # x tile
                pl.BlockSpec((D, 2 * D), lambda i: (0, 0),          # [W1^T|Wg^T]
                             pipeline_mode=pl.Buffered(1)),         # resident
                pl.BlockSpec((1, 2 * D), lambda i: (0, 0),          # [b1,bg]
                             pipeline_mode=pl.Buffered(1)),         # resident
            ],
            out_specs=pl.BlockSpec((tm_eff, D), lambda i: (i, 0)),
        ),
        compiler_params=pltpu.CompilerParams(
            dimension_semantics=("parallel",),
            vmem_limit_bytes=vmem_limit,
        ),
    )(x_in, w_cat, b_cat)

    return out[:B] if B_pad != B else out


def highway_ref(x, w1, b1, wg, bg):
    """Pure-JAX reference mirroring the PyTorch forward (f32)."""
    normal_fc = jnp.tanh(x @ w1.T + b1)
    gate = jax.nn.sigmoid(x @ wg.T + bg)
    return normal_fc * gate + x * (1.0 - gate)


if __name__ == "__main__":
    B, D = 32, 128   # batch, hidden dim (D multiple of 128 -> lane-aligned split)
    key = jax.random.PRNGKey(0)
    kx, kw1, kb1, kwg, kbg = jax.random.split(key, 5)

    x = jax.random.normal(kx, (B, D), dtype=jnp.float32)
    # nn.Linear default init ~ U(-1/sqrt(in), 1/sqrt(in)); deterministic here.
    bound = 1.0 / jnp.sqrt(D)
    w1 = jax.random.uniform(kw1, (D, D), minval=-bound, maxval=bound, dtype=jnp.float32)
    b1 = jax.random.uniform(kb1, (D,), minval=-bound, maxval=bound, dtype=jnp.float32)
    wg = jax.random.uniform(kwg, (D, D), minval=-bound, maxval=bound, dtype=jnp.float32)
    bg = jax.random.uniform(kbg, (D,), minval=-bound, maxval=bound, dtype=jnp.float32)

    out = highway(x, w1, b1, wg, bg)
    out = jax.block_until_ready(out)

    ref = highway_ref(x, w1, b1, wg, bg)
    # bf16 matmul inputs -> loosened tolerance vs. the f32 reference.
    assert jnp.allclose(out, ref, atol=3e-2, rtol=3e-2), "mismatch vs reference"

    print("KERNEL_OK")
</pallas_src>

<mosaic_0001>
module attributes {stable_mosaic.version = 11 : i64} {
  func.func @highway_kernel(%arg0: i32, %arg1: memref<16x128xf32, #tpu.memory_space<vmem>>, %arg2: memref<128x256xbf16, #tpu.memory_space<vmem>>, %arg3: memref<1x256xf32, #tpu.memory_space<vmem>>, %arg4: memref<16x128xf32, #tpu.memory_space<vmem>>) attributes {dimension_semantics = [#tpu.dimension_semantics<parallel>], iteration_bounds = array<i64: 2>, scalar_prefetch = 0 : i64, scratch_operands = 0 : i64, tpu.core_type = #tpu.core_type<tc>, window_params = [{transform_indices = @transform_0, window_bounds = array<i64: 16, 128>}, {pipeline_mode = #tpu.pipeline_mode<synchronous>, transform_indices = @transform_1, window_bounds = array<i64: 128, 256>}, {pipeline_mode = #tpu.pipeline_mode<synchronous>, transform_indices = @transform_2, window_bounds = array<i64: 1, 256>}, {transform_indices = @transform_3, window_bounds = array<i64: 16, 128>}]} {
    %c0 = arith.constant 0 : index
    %c0_0 = arith.constant 0 : index
    %0 = vector.load %arg1[%c0, %c0_0] : memref<16x128xf32, #tpu.memory_space<vmem>>, vector<16x128xf32>
    %1 = arith.truncf %0 : vector<16x128xf32> to vector<16x128xbf16>
    %c0_1 = arith.constant 0 : index
    %c0_2 = arith.constant 0 : index
    %2 = vector.load %arg2[%c0_1, %c0_2] : memref<128x256xbf16, #tpu.memory_space<vmem>>, vector<128x256xbf16>
    %cst = arith.constant dense<0.000000e+00> : vector<16x256xf32>
    %3 = tpu.matmul %1, %2, %cst {dimension_numbers = #tpu.dot_dimension_numbers<[1], [0], [0], [1], [0, 0, 1, 1], [], []>} : vector<16x128xbf16>, vector<128x256xbf16>, vector<16x256xf32> -> vector<16x256xf32>
    %c0_3 = arith.constant 0 : index
    %c0_4 = arith.constant 0 : index
    %4 = vector.load %arg3[%c0_3, %c0_4] : memref<1x256xf32, #tpu.memory_space<vmem>>, vector<1x256xf32>
    %5 = vector.broadcast %4 : vector<1x256xf32> to vector<16x256xf32>
    %6 = arith.addf %3, %5 : vector<16x256xf32>
    %7 = vector.extract_strided_slice %6 {offsets = [0, 0], sizes = [16, 128], strides = [1, 1]} : vector<16x256xf32> to vector<16x128xf32>
    %8 = math.tanh %7 : vector<16x128xf32>
    %9 = vector.extract_strided_slice %6 {offsets = [0, 128], sizes = [16, 128], strides = [1, 1]} : vector<16x256xf32> to vector<16x128xf32>
    %cst_5 = arith.constant 5.000000e-01 : f32
    %10 = vector.broadcast %cst_5 : f32 to vector<16x128xf32>
    %11 = arith.mulf %10, %9 : vector<16x128xf32>
    %12 = math.tanh %11 : vector<16x128xf32>
    %cst_6 = arith.constant 1.000000e+00 : f32
    %13 = vector.broadcast %cst_6 : f32 to vector<16x128xf32>
    %14 = arith.addf %12, %13 : vector<16x128xf32>
    %cst_7 = arith.constant 5.000000e-01 : f32
    %15 = vector.broadcast %cst_7 : f32 to vector<16x128xf32>
    %16 = arith.mulf %15, %14 : vector<16x128xf32>
    %17 = arith.subf %8, %0 : vector<16x128xf32>
    %18 = arith.mulf %16, %17 : vector<16x128xf32>
    %19 = arith.addf %0, %18 : vector<16x128xf32>
    %c0_8 = arith.constant 0 : index
    %c0_9 = arith.constant 0 : index
    %20 = vector.load %arg4[%c0_8, %c0_9] : memref<16x128xf32, #tpu.memory_space<vmem>>, vector<16x128xf32>
    tpu.vector_store %arg4[%c0_8, %c0_9], %19 {strides = array<i32>} : memref<16x128xf32, #tpu.memory_space<vmem>>, vector<16x128xf32>,
    return
  }
  func.func @transform_0(%arg0: i32) -> (i32, i32) {
    %c0_i32 = arith.constant 0 : i32
    %c0_i32_0 = arith.constant 0 : i32
    return %arg0, %c0_i32 : i32, i32
  }
  func.func @transform_1(%arg0: i32) -> (i32, i32) {
    %c0_i32 = arith.constant 0 : i32
    %c0_i32_0 = arith.constant 0 : i32
    %c0_i32_1 = arith.constant 0 : i32
    return %c0_i32, %c0_i32_0 : i32, i32
  }
  func.func @transform_2(%arg0: i32) -> (i32, i32) {
    %c0_i32 = arith.constant 0 : i32
    %c0_i32_0 = arith.constant 0 : i32
    %c0_i32_1 = arith.constant 0 : i32
    return %c0_i32, %c0_i32_0 : i32, i32
  }
  func.func @transform_3(%arg0: i32) -> (i32, i32) {
    %c0_i32 = arith.constant 0 : i32
    %c0_i32_0 = arith.constant 0 : i32
    return %arg0, %c0_i32 : i32, i32
  }
}

</mosaic_0001>

<llo_original>
// kernel: tpu_custom_call.1
$region0: #{tpu_custom_call.1}
  #allocation0 [shape = 'u32[]', space=smem, size = 0x4, offset = 0x4, fixed_abs, tag = 'smem constant byte address 0x4 - core index']
  #allocation1 [shape = 'u32[144,128]{1,0:T(1,128)}', space=vmem, size = 0x12000, scoped, tag = 'internal scratch']
  %s0 = inlined_call_operand.hbm [shape: f32[32,128], index: 0, kind: input, shape index: {}]
  %s1 = inlined_call_operand.hbm [shape: bf16[128,256], index: 1, kind: input, shape index: {}]
  %s2 = inlined_call_operand.vmem [shape: f32[1,256], index: 2, kind: input, shape index: {}]
  %s3 = inlined_call_operand.hbm [shape: f32[32,128], index: 3, kind: output, shape index: {}]
  %s4 = sld [smem:[#allocation0]]
  $region53: #{tpu_custom_call.1} parent=0
    _
  %s6 = ssub.s32 1, %s4
  %s7 = scalar_select 0, %s6, %s4
  $region1: #{tpu_custom_call.1} parent=0
    #allocation2 [shape = 'u8[16384]{0}', space=vmem, size = 0x4000, scoped, tag = 'input window, operand 0']
    #allocation3 [shape = 's32[2]{0}', space=sflag, size = 0x8, scoped, tag = 'scoped memory for tpu_custom_call.1']
    #allocation4 [shape = 's32[2]{0}', space=sflag, size = 0x8, scoped, tag = 'scoped memory for tpu_custom_call.1']
    #allocation5 [shape = 'u8[65536]{0}', space=vmem, size = 0x10000, scoped, tag = 'input window, operand 1, single buffered']
    #allocation6 [shape = 's32[1]{0}', space=sflag, size = 0x4, scoped, tag = 'scoped memory for tpu_custom_call.1']
    #allocation7 [shape = 'u8[16384]{0}', space=vmem, size = 0x4000, scoped, tag = 'output window, operand 0']
    %8 = vsyncpa [#allocation3], 0
    %s9 = scalar_lea.sflag [#allocation3], 1
    %10 = vsyncpa %s9, 0
    %11 = vsyncpa [#allocation6], 0
    %12 = vsyncpa [#allocation4], 0
    %s13 = scalar_lea.sflag [#allocation4], 1
    %14 = vsyncpa %s13, 0
    loop: start=0, step=1, limit=4
    $region2: #{tpu_custom_call.1} parent=1 // loop_pre_header
      _
    $region3: #{tpu_custom_call.1} parent=1 // loop_header
      %s16 = sphi 0, %s20
      %p17 = scmp.ge.s32.totalorder %s16, 4
      %s26 = sphi 0, %s28
      %s29 = sphi 0, %s26
      %s30 = sphi 0, %s29
      %s46 = sphi 0, %s30
      %s50 = sphi 0, %s50
      %s52 = sphi 0, %s50
      %s53 = sphi 0, %s52
      %s67 = sphi 0, %s53
      %s71 = sphi 0, %s71
      %s73 = sphi 0, %s71
      %s74 = sphi 0, %s73
      %s88 = sphi 0, %s74
      %s94 = sphi 0, %s96
      %s97 = sphi 0, %s94
      %s98 = sphi 0, %s97
      %s114 = sphi 0, %s98
    $region4: #{tpu_custom_call.1} parent=1 // loop_header_branch
      %19 = sbr.rel (%p17) target = $region8
    $region5: #{tpu_custom_call.1} parent=1 // loop_body
      %s21 = ssub.s32 %s16, 1
      %s22 = ssub.s32 %s16, 2
      %s23 = sadd.s32 %s16, 1
      %s24 = ssub.s32 %s16, %s23
      %p25 = scmp.eq.s32.totalorder %s24, 0
      %s27 = sadd.s32 %s26, 1
      %s28 = scalar_select %p25, %s26, %s27
      %p31 = pneg %p25
      %p32 = scmp.eq.s32.totalorder %s16, 1
      %p33 = por %p31, %p32
      %p34 = scmp.ne.s32.totalorder %s26, %s29
      %p35 = scmp.eq.s32.totalorder %s16, 0
      %p36 = por %p34, %p35
      %p37 = scmp.ne.s32.totalorder %s26, %s29
      %p38 = scmp.eq.s32.totalorder %s21, 1
      %p39 = por %p37, %p38
      %p40 = scmp.ne.s32.totalorder %s29, %s30
      %p41 = scmp.eq.s32.totalorder %s21, 0
      %p42 = por %p40, %p41
      %p43 = scmp.ne.s32.totalorder %s29, %s30
      %p44 = scmp.eq.s32.totalorder %s22, 1
      %p45 = por %p43, %p44
      %p47 = scmp.ne.s32.totalorder %s30, %s46
      %p48 = scmp.eq.s32.totalorder %s22, 0
      %p49 = por %p47, %p48
      %s51 = sadd.s32 %s50, 1
      %p54 = scmp.eq.s32.totalorder %s16, 1
      %p55 = scmp.ne.s32.totalorder %s50, %s52
      %p56 = scmp.eq.s32.totalorder %s16, 0
      %p57 = por %p55, %p56
      %p58 = scmp.ne.s32.totalorder %s50, %s52
      %p59 = scmp.eq.s32.totalorder %s21, 1
      %p60 = por %p58, %p59
      %p61 = scmp.ne.s32.totalorder %s52, %s53
      %p62 = scmp.eq.s32.totalorder %s21, 0
      %p63 = por %p61, %p62
      %p64 = scmp.ne.s32.totalorder %s52, %s53
      %p65 = scmp.eq.s32.totalorder %s22, 1
      %p66 = por %p64, %p65
      %p68 = scmp.ne.s32.totalorder %s53, %s67
      %p69 = scmp.eq.s32.totalorder %s22, 0
      %p70 = por %p68, %p69
      %s72 = sadd.s32 %s71, 1
      %p75 = scmp.eq.s32.totalorder %s16, 1
      %p76 = scmp.ne.s32.totalorder %s71, %s73
      %p77 = scmp.eq.s32.totalorder %s16, 0
      %p78 = por %p76, %p77
      %p79 = scmp.ne.s32.totalorder %s71, %s73
      %p80 = scmp.eq.s32.totalorder %s21, 1
      %p81 = por %p79, %p80
      %p82 = scmp.ne.s32.totalorder %s73, %s74
      %p83 = scmp.eq.s32.totalorder %s21, 0
      %p84 = por %p82, %p83
      %p85 = scmp.ne.s32.totalorder %s73, %s74
      %p86 = scmp.eq.s32.totalorder %s22, 1
      %p87 = por %p85, %p86
      %p89 = scmp.ne.s32.totalorder %s74, %s88
      %p90 = scmp.eq.s32.totalorder %s22, 0
      %p91 = por %p89, %p90
      %s92 = ssub.s32 %s16, %s23
      %p93 = scmp.eq.s32.totalorder %s92, 0
      %s95 = sadd.s32 %s94, 1
      %s96 = scalar_select %p93, %s94, %s95
      %p99 = pneg %p93
      %p100 = scmp.eq.s32.totalorder %s16, 1
      %p101 = por %p99, %p100
      %p102 = scmp.ne.s32.totalorder %s94, %s97
      %p103 = scmp.eq.s32.totalorder %s16, 0
      %p104 = por %p102, %p103
      %p105 = scmp.ne.s32.totalorder %s94, %s97
      %p106 = scmp.eq.s32.totalorder %s21, 1
      %p107 = por %p105, %p106
      %p108 = scmp.ne.s32.totalorder %s97, %s98
      %p109 = scmp.eq.s32.totalorder %s21, 0
      %p110 = por %p108, %p109
      %p111 = scmp.ne.s32.totalorder %s97, %s98
      %p112 = scmp.eq.s32.totalorder %s22, 1
      %p113 = por %p111, %p112
      %p115 = scmp.ne.s32.totalorder %s98, %s114
      %p116 = scmp.eq.s32.totalorder %s22, 0
      %p117 = por %p115, %p116
      %p118 = scmp.le.s32.totalorder 1, %s16
      %p119 = scmp.lt.s32.totalorder %s16, 3
      %p120 = pnand %p118, %p119
      %p121 = pneg %p120
      // Predicated region
      $region9: #{tpu_custom_call.1} parent=5 // pred_check
        _
      $region10: #{tpu_custom_call.1} parent=5 // pred_check_branch
        %123 = sbr.rel (%p120) target = $region12
      $region11: #{tpu_custom_call.1} parent=5 // pred_region
        %s124 = ssub.s32 %s16, 1
        // Predicated region
        $region13: #{tpu_custom_call.1} parent=11 // pred_check
          %p125 = pneg %p63
        $region14: #{tpu_custom_call.1} parent=11 // pred_check_branch
          %127 = sbr.rel (%p125) target = $region16
        $region15: #{tpu_custom_call.1} parent=11 // pred_region
          %s129 = ssub.s32 2048, 2048
          %130 = vsyncadd [#allocation6], %s129
          %s131 = sshll.u32 [#allocation5], 4
          %s132 = int_to_ptr.vmem [resolvable:$true] %s131
          %137 = dma.hbm_to_vmem [thread:$0]  %s1, 2048, %s132, [#allocation6], 128, 128, 8
        $region16: #{tpu_custom_call.1} parent=11 // pred_fallthru
          _
        // Predicated region
        $region17: #{tpu_custom_call.1} parent=11 // pred_check
          %p138 = pneg %p84
        $region18: #{tpu_custom_call.1} parent=11 // pred_check_branch
          %140 = sbr.rel (%p138) target = $region20
        $region19: #{tpu_custom_call.1} parent=11 // pred_region
          _
        $region20: #{tpu_custom_call.1} parent=11 // pred_fallthru
          _
      $region12: #{tpu_custom_call.1} parent=5 // pred_fallthru
        _
      %p141 = scmp.lt.s32.totalorder %s16, 2
      // Predicated region
      $region21: #{tpu_custom_call.1} parent=5 // pred_check
        %p142 = pneg %p141
      $region22: #{tpu_custom_call.1} parent=5 // pred_check_branch
        %144 = sbr.rel (%p142) target = $region24
      $region23: #{tpu_custom_call.1} parent=5 // pred_region
        // Predicated region
        $region25: #{tpu_custom_call.1} parent=23 // pred_check
          %p145 = pneg %p36
        $region26: #{tpu_custom_call.1} parent=23 // pred_check_branch
          %147 = sbr.rel (%p145) target = $region28
        $region27: #{tpu_custom_call.1} parent=23 // pred_region
          %s148 = sand.u32 %s26, 1
          %s149 = scalar_lea.sflag [#allocation3], %s148
          %s150 = sand.u32 %s26, 1
          %s151 = smul.addr %s150, 16
          %s152 = scalar_lea.vmem [#allocation2], %s151
          %s153 = smul.u32 2, %s16
          %s155 = ssub.s32 256, 256
          %156 = vsyncadd %s149, %s155
          %s157 = smul.addr %s153, 128
          %s158 = scalar_lea.hbm %s0, %s157
          %s159 = sshll.u32 %s152, 4
          %s160 = int_to_ptr.vmem [resolvable:$true] %s159
          %165 = dma.hbm_to_vmem [thread:$0]  %s158, 256, %s160, %s149, 128, 128, 8
        $region28: #{tpu_custom_call.1} parent=23 // pred_fallthru
          _
      $region24: #{tpu_custom_call.1} parent=5 // pred_fallthru
        _
      %p166 = scmp.le.s32.totalorder 1, %s16
      %p167 = scmp.lt.s32.totalorder %s16, 3
      %p168 = pnand %p166, %p167
      %p169 = pneg %p168
      // Predicated region
      $region29: #{tpu_custom_call.1} parent=5 // pred_check
        _
      $region30: #{tpu_custom_call.1} parent=5 // pred_check_branch
        %171 = sbr.rel (%p168) target = $region32
      $region31: #{tpu_custom_call.1} parent=5 // pred_region
        %s172 = ssub.s32 %s16, 1
        %s173 = sand.u32 %s29, 1
        %s174 = scalar_lea.sflag [#allocation3], %s173
        %s175 = sand.u32 %s29, 1
        %s176 = smul.addr %s175, 16
        %s177 = scalar_lea.vmem [#allocation2], %s176
        // Predicated region
        $region33: #{tpu_custom_call.1} parent=31 // pred_check
          %p178 = pneg %p42
        $region34: #{tpu_custom_call.1} parent=31 // pred_check_branch
          %180 = sbr.rel (%p178) target = $region36
        $region35: #{tpu_custom_call.1} parent=31 // pred_region
          %181 = dma.done %s174, 256
        $region36: #{tpu_custom_call.1} parent=31 // pred_fallthru
          _
        // Predicated region
        $region37: #{tpu_custom_call.1} parent=31 // pred_check
          %p182 = pneg %p63
        $region38: #{tpu_custom_call.1} parent=31 // pred_check_branch
          %184 = sbr.rel (%p182) target = $region40
        $region39: #{tpu_custom_call.1} parent=31 // pred_region
          %185 = dma.done [#allocation6], 2048
        $region40: #{tpu_custom_call.1} parent=31 // pred_fallthru
          _
        %s186 = sand.u32 %s29, 1
        %s187 = scalar_lea.sflag [#allocation3], %s186
        %s188 = sand.u32 %s29, 1
        %s189 = smul.addr %s188, 16
        %s190 = scalar_lea.vmem [#allocation2], %s189
        %p191 = pneg %p42
        %p192 = pneg %p39
        %p193 = pneg %p63
        %p194 = pneg %p60
        %p195 = pneg %p84
        %p196 = pneg %p81
        %p197 = pneg %p110
        %p198 = pneg %p107
        %s199 = sand.u32 %s97, 1
        %s200 = scalar_lea.sflag [#allocation4], %s199
        %s201 = sand.u32 %s97, 1
        %s202 = smul.addr %s201, 16
        %s203 = scalar_lea.vmem [#allocation7], %s202
        %s204 = smul.u32 2, %s21
        %s205 = smul.u32 2, %s21
        %v207 = vld [vmem:[%s177] sm:$0xff]
        %v208 = vld [vmem:[%s177 + $0x8] sm:$0xff]
        %v209 = vpack.c.bf16 %v208, %v207
        %v210 = vld [vmem:[#allocation5] sm:$0xff]
        %v211 = vld [vmem:[#allocation5 + $0x8] sm:$0xff]
        %v212 = vld [vmem:[#allocation5 + $0x10] sm:$0xff]
        %v213 = vld [vmem:[#allocation5 + $0x18] sm:$0xff]
        %v214 = vld [vmem:[#allocation5 + $0x20] sm:$0xff]
        %v215 = vld [vmem:[#allocation5 + $0x28] sm:$0xff]
        %v216 = vld [vmem:[#allocation5 + $0x30] sm:$0xff]
        %v217 = vld [vmem:[#allocation5 + $0x38] sm:$0xff]
        %v218 = vld [vmem:[#allocation5 + $0x40] sm:$0xff]
        %v219 = vld [vmem:[#allocation5 + $0x48] sm:$0xff]
        %v220 = vld [vmem:[#allocation5 + $0x50] sm:$0xff]
        %v221 = vld [vmem:[#allocation5 + $0x58] sm:$0xff]
        %v222 = vld [vmem:[#allocation5 + $0x60] sm:$0xff]
        %v223 = vld [vmem:[#allocation5 + $0x68] sm:$0xff]
        %v224 = vld [vmem:[#allocation5 + $0x70] sm:$0xff]
        %v225 = vld [vmem:[#allocation5 + $0x78] sm:$0xff]
        %v226 = vld [vmem:[%s2] sm:$0x3]
        %v228 = vlaneseq
        %v229 = vshrl.u32 %v228, 7
        %v230 = vsub.s32 0, %v229
        %v231 = vrot.slane %v226, %v230
        %v232 = vlaneseq
        %v233 = vshrl.u32 %v232, 7
        %v234 = vsub.s32 1, %v233
        %v235 = vrot.slane %v226, %v234
        %v254 = vunpack.c.l.b16 %v210
        %v255 = vunpack.c.h.b16 %v210
        %v256 = vunpack.c.l.b16 %v211
        %v257 = vunpack.c.h.b16 %v211
        %v258 = vunpack.c.l.b16 %v212
        %v259 = vunpack.c.h.b16 %v212
        %v260 = vunpack.c.l.b16 %v213
        %v261 = vunpack.c.h.b16 %v213
        %v262 = vunpack.c.l.b16 %v214
        %v263 = vunpack.c.h.b16 %v214
        %v264 = vunpack.c.l.b16 %v215
        %v265 = vunpack.c.h.b16 %v215
        %v266 = vunpack.c.l.b16 %v216
        %v267 = vunpack.c.h.b16 %v216
        %v268 = vunpack.c.l.b16 %v217
        %v269 = vunpack.c.h.b16 %v217
        %v270 = vunpack.c.l.b16 %v218
        %v271 = vunpack.c.h.b16 %v218
        %v272 = vunpack.c.l.b16 %v219
        %v273 = vunpack.c.h.b16 %v219
        %v274 = vunpack.c.l.b16 %v220
        %v275 = vunpack.c.h.b16 %v220
        %v276 = vunpack.c.l.b16 %v221
        %v277 = vunpack.c.h.b16 %v221
        %v278 = vunpack.c.l.b16 %v222
        %v279 = vunpack.c.h.b16 %v222
        %v280 = vunpack.c.l.b16 %v223
        %v281 = vunpack.c.h.b16 %v223
        %v282 = vunpack.c.l.b16 %v224
        %v283 = vunpack.c.h.b16 %v224
        %v284 = vunpack.c.l.b16 %v225
        %v285 = vunpack.c.h.b16 %v225
        %v286 = vpack.c.b16 %v256, %v254
        %v287 = vpack.c.b16 %v257, %v255
        %v288 = vpack.c.b16 %v260, %v258
        %v289 = vpack.c.b16 %v261, %v259
        %v290 = vpack.c.b16 %v264, %v262
        %v291 = vpack.c.b16 %v265, %v263
        %v292 = vpack.c.b16 %v268, %v266
        %v293 = vpack.c.b16 %v269, %v267
        %v294 = vpack.c.b16 %v272, %v270
        %v295 = vpack.c.b16 %v273, %v271
        %v296 = vpack.c.b16 %v276, %v274
        %v297 = vpack.c.b16 %v277, %v275
        %v298 = vpack.c.b16 %v280, %v278
        %v299 = vpack.c.b16 %v281, %v279
        %v300 = vpack.c.b16 %v284, %v282
        %v301 = vpack.c.b16 %v285, %v283
        %318 = vmatprep.subr.bf16.mxu0 %v301
        %319 = vmatpush1.bf16.msra.mxu0 %v300
        %320 = vmatprep.subr.bf16.mxu0 %v299
        %321 = vmatpush1.bf16.msra.mxu0 %v298
        %322 = vmatprep.subr.bf16.mxu0 %v297
        %323 = vmatpush1.bf16.msra.mxu0 %v296
        %324 = vmatprep.subr.bf16.mxu0 %v295
        %325 = vmatpush1.bf16.msra.mxu0 %v294
        %326 = vmatprep.subr.bf16.mxu0 %v293
        %327 = vmatpush1.bf16.msra.mxu0 %v292
        %328 = vmatprep.subr.bf16.mxu0 %v291
        %329 = vmatpush1.bf16.msra.mxu0 %v290
        %330 = vmatprep.subr.bf16.mxu0 %v289
        %331 = vmatpush1.bf16.msra.mxu0 %v288
        %332 = vmatprep.subr.bf16.mxu0 %v287
        %333 = vmatpush1.bf16.msra.mxu0 %v286
        %334 = vmatprep.subr.bf16.mxu0 0
        %335 = vmatpush2.bf16.msra.mxu0 0
        %336 = vmatprep.subr.bf16.mxu0 0
        %337 = vmatpush2.bf16.msra.mxu0 0
        %338 = vmatprep.subr.bf16.mxu0 0
        %339 = vmatpush2.bf16.msra.mxu0 0
        %340 = vmatprep.subr.bf16.mxu0 0
        %341 = vmatpush2.bf16.msra.mxu0 0
        %342 = vmatprep.subr.bf16.mxu0 0
        %343 = vmatpush2.bf16.msra.mxu0 0
        %344 = vmatprep.subr.bf16.mxu0 0
        %345 = vmatpush2.bf16.msra.mxu0 0
        %346 = vmatprep.subr.bf16.mxu0 0
        %347 = vmatpush2.bf16.msra.mxu0 0
        %348 = vmatprep.subr.bf16.mxu0 0
        %349 = vmatpush2.bf16.msra.mxu0 0
        %350 = vmatprep.mubr.bf16.mxu0 0
        %351 = vmatmul.mubr.bf16.gmra.mxu0 %v209
        %v352 = vpop.f32.mrf.mxu0
        %v353 = vadd.f32 %v231, %v352
        %v354 = vpop.f32.mrf.mxu0
        %v355 = vadd.f32 %v235, %v354
        %v356 = vpop.f32.mrf.mxu0
        %v357 = vadd.f32 %v231, %v356
        %v358 = vpop.f32.mrf.mxu0
        %v359 = vadd.f32 %v235, %v358
        %360 = vdwg.mxu0
        %v361 = vtanh.pop %v353
        %v362 = vtanh.pop %v357
        %v363 = vmul.f32 %v355, 0.5
        %v364 = vmul.f32 %v359, 0.5
        %v365 = vtanh.pop %v363
        %v366 = vtanh.pop %v364
        %v367 = vadd.f32 %v365, 1.0
        %v368 = vadd.f32 %v366, 1.0
        %v369 = vmul.f32 %v367, 0.5
        %v370 = vmul.f32 %v368, 0.5
        %v371 = vsub.f32 %v361, %v207
        %v372 = vsub.f32 %v362, %v208
        %v373 = vmul.f32 %v369, %v371
        %v374 = vmul.f32 %v370, %v372
        %v375 = vadd.f32 %v207, %v373
        %v376 = vadd.f32 %v208, %v374
        %377 = vst [vmem:[%s203] sm:$0xff] %v375
        %378 = vst [vmem:[%s203 + $0x8] sm:$0xff] %v376
        %s379 = sand.u32 %s97, 1
        %s380 = scalar_lea.sflag [#allocation4], %s379
        %s381 = sand.u32 %s97, 1
        %s382 = smul.addr %s381, 16
        %s383 = scalar_lea.vmem [#allocation7], %s382
        // Predicated region
        $region41: #{tpu_custom_call.1} parent=31 // pred_check
          %p384 = pneg %p107
        $region42: #{tpu_custom_call.1} parent=31 // pred_check_branch
          %386 = sbr.rel (%p384) target = $region44
        $region43: #{tpu_custom_call.1} parent=31 // pred_region
          %s387 = smul.u32 2, %s21
          %s389 = ssub.s32 256, 256
          %390 = vsyncadd %s380, %s389
          %s391 = smul.addr %s387, 128
          %s392 = scalar_lea.hbm %s3, %s391
          %s393 = sshll.u32 %s383, 4
          %s394 = int_to_ptr.vmem [resolvable:$true] %s393
          %399 = dma.vmem_to_hbm [thread:$0]  %s394, 256, %s392, %s380, 128, 128, 8
        $region44: #{tpu_custom_call.1} parent=31 // pred_fallthru
          _
      $region32: #{tpu_custom_call.1} parent=5 // pred_fallthru
        _
      %p400 = scmp.le.s32.totalorder 2, %s16
      // Predicated region
      $region45: #{tpu_custom_call.1} parent=5 // pred_check
        %p401 = pneg %p400
      $region46: #{tpu_custom_call.1} parent=5 // pred_check_branch
        %403 = sbr.rel (%p401) target = $region48
      $region47: #{tpu_custom_call.1} parent=5 // pred_region
        %s404 = ssub.s32 %s16, 2
        // Predicated region
        $region49: #{tpu_custom_call.1} parent=47 // pred_check
          %p405 = pneg %p113
        $region50: #{tpu_custom_call.1} parent=47 // pred_check_branch
          %407 = sbr.rel (%p405) target = $region52
        $region51: #{tpu_custom_call.1} parent=47 // pred_region
          %s408 = sand.u32 %s98, 1
          %s409 = scalar_lea.sflag [#allocation4], %s408
          %s410 = sand.u32 %s98, 1
          %s411 = smul.addr %s410, 16
          %s412 = scalar_lea.vmem [#allocation7], %s411
          %413 = dma.done %s409, 256
        $region52: #{tpu_custom_call.1} parent=47 // pred_fallthru
          _
      $region48: #{tpu_custom_call.1} parent=5 // pred_fallthru
        _
    $region6: #{tpu_custom_call.1} parent=1 // loop_footer
      %s20 = sadd.s32 1, %s16
    $region7: #{tpu_custom_call.1} parent=1 // loop_footer_branch
      %15 = sbr.rel target = $region3
    $region8: #{tpu_custom_call.1} parent=1 // loop_exit
      _
    %414 = vsyncpa [#allocation3], 1
    %s415 = scalar_lea.sflag [#allocation3], 1
    %416 = vsyncpa %s415, 1
    %417 = vsyncpa [#allocation6], 1
    %418 = vsyncpa [#allocation4], 1
    %s419 = scalar_lea.sflag [#allocation4], 1
    %420 = vsyncpa %s419, 1

</llo_original>
